<compile_context>
chip_gen: v7x
topology: tpu7x:2x2x1
jax: 0.10.0
libtpu: 0.0.40
codegen_flags: <defaults>
</compile_context>

<pallas_src>
import jax
import jax.numpy as jnp
from jax.experimental import pallas as pl
from jax.experimental.pallas import tpu as pltpu

# Logical (PyTorch) layer sizes and the 128-lane padded sizes used on-chip.
_LOGICAL_SIZES = [(5, 300), (300, 150), (150, 150), (150, 80), (80, 1)]
_PADDED_SIZES = [(5, 384), (384, 256), (256, 256), (256, 128), (128, 128)]

_DEFAULT_TILE_B = 1024  # ~<7 MB peak VMEM per step, safe even for v7x's 32 MiB scoped limit


def _mlp_kernel(x_ref,
                w1_ref, b1_ref,
                w2_ref, b2_ref,
                w3_ref, b3_ref,
                w4_ref, b4_ref,
                w5_ref, b5_ref,
                o_ref):
    """All 5 layers fused: bf16 MXU matmuls with f32 accumulation, f32 bias+ReLU."""
    x = x_ref[...].astype(jnp.bfloat16)  # (TILE_B, 5); K=5 left unpadded on purpose

    h = jnp.dot(x, w1_ref[...], preferred_element_type=jnp.float32) + b1_ref[...]
    h = jnp.maximum(h, 0.0)

    h = jnp.dot(h.astype(jnp.bfloat16), w2_ref[...],
                preferred_element_type=jnp.float32) + b2_ref[...]
    h = jnp.maximum(h, 0.0)

    h = jnp.dot(h.astype(jnp.bfloat16), w3_ref[...],
                preferred_element_type=jnp.float32) + b3_ref[...]
    h = jnp.maximum(h, 0.0)

    h = jnp.dot(h.astype(jnp.bfloat16), w4_ref[...],
                preferred_element_type=jnp.float32) + b4_ref[...]
    h = jnp.maximum(h, 0.0)

    out = jnp.dot(h.astype(jnp.bfloat16), w5_ref[...],
                  preferred_element_type=jnp.float32) + b5_ref[...]
    # Lane-dense (TILE_B, 128) store; only column 0 carries the real prediction.
    o_ref[...] = out.astype(o_ref.dtype)


def init_params(key):
    """Deterministic init mimicking torch.nn.Linear default (uniform +/- 1/sqrt(fan_in))."""
    params = []
    for (fan_in, fan_out) in _LOGICAL_SIZES:
        key, kw, kb = jax.random.split(key, 3)
        bound = 1.0 / jnp.sqrt(float(fan_in))
        w = jax.random.uniform(kw, (fan_in, fan_out), jnp.float32, -bound, bound)
        b = jax.random.uniform(kb, (fan_out,), jnp.float32, -bound, bound)
        params.append((w, b))
    return params


def prepare_params(params):
    """Zero-pad each layer to the 128-multiple on-chip sizes; weights -> bf16, biases stay f32.

    Padding is exact: padded bias entries are 0, padded weight rows multiply zero
    activations (ReLU(0)=0), padded weight columns produce zero activations.
    """
    prepped = []
    for (w, b), (lin, lout), (pin, pout) in zip(params, _LOGICAL_SIZES, _PADDED_SIZES):
        wp = jnp.zeros((pin, pout), jnp.float32).at[:lin, :lout].set(w)
        bp = jnp.zeros((1, pout), jnp.float32).at[:, :lout].set(jnp.reshape(b, (1, lout)))
        prepped.append((wp.astype(jnp.bfloat16), bp))
    return prepped


def mlp_forward(x, params, tile_b=_DEFAULT_TILE_B):
    """x: (B, 5) float32. params: list of (W:(in,out) f32, b:(out,) f32). Returns (B, 1) f32."""
    B = x.shape[0]
    prepped = prepare_params(params)

    # Batch tile: multiple of 8, large to amortize per-grid-step overhead, clamped for tiny B.
    tile = min(tile_b, max(8, ((B + 7) // 8) * 8))
    n_tiles = (B + tile - 1) // tile
    b_pad = n_tiles * tile

    x_p = jnp.zeros((b_pad, 5), jnp.float32).at[:B, :].set(x.astype(jnp.float32))

    flat = []
    in_specs = [pl.BlockSpec((tile, 5), lambda i: (i, 0))]  # tiled over batch
    for (w, b) in prepped:
        flat.extend([w, b])
        # Constant index maps -> weights/biases stay resident in VMEM across grid steps.
        in_specs.append(pl.BlockSpec(w.shape, lambda i: (0, 0)))
        in_specs.append(pl.BlockSpec(b.shape, lambda i: (0, 0)))

    out_w = _PADDED_SIZES[-1][1]  # 128: lane-dense output slab
    out_specs = pl.BlockSpec((tile, out_w), lambda i: (i, 0))

    param_bytes = sum(int(a.size) * a.dtype.itemsize for a in flat)
    flops_per_row = 2 * sum(pin * pout for (pin, pout) in _PADDED_SIZES)
    cost = pl.CostEstimate(
        flops=int(flops_per_row * b_pad),
        transcendentals=0,
        bytes_accessed=int(b_pad * 5 * 4 + b_pad * out_w * 4 + param_bytes),
    )

    out = pl.pallas_call(
        _mlp_kernel,
        out_shape=jax.ShapeDtypeStruct((b_pad, out_w), jnp.float32),
        grid=(n_tiles,),
        in_specs=in_specs,
        out_specs=out_specs,
        compiler_params=pltpu.CompilerParams(
            dimension_semantics=("parallel",)),
        cost_estimate=cost,
    )(x_p, *flat)

    # Slice back to the logical (B, 1) prediction.
    return out[:B, 0:1]


def reference_forward(x, params):
    """Pure-JAX reference with numerics matching the kernel (bf16 dot inputs, f32 accumulation)."""
    h = x.astype(jnp.float32)
    for i, (w, b) in enumerate(params):
        h = jnp.dot(h.astype(jnp.bfloat16), w.astype(jnp.bfloat16),
                    preferred_element_type=jnp.float32) + jnp.reshape(b, (1, -1))
        if i < len(params) - 1:
            h = jnp.maximum(h, 0.0)
    return h


if __name__ == "__main__":
    key = jax.random.PRNGKey(0)
    key, kx = jax.random.split(key)

    B = 8  # small test batch
    x = jax.random.normal(kx, (B, 5), jnp.float32)
    params = init_params(key)

    out = mlp_forward(x, params)
    out = jax.block_until_ready(out)

    ref = reference_forward(x, params)
    assert out.shape == (B, 1), out.shape
    assert jnp.allclose(out, ref, atol=2e-2, rtol=2e-2), (out, ref)

    print("KERNEL_OK")
</pallas_src>

<mosaic_0001>
module attributes {stable_mosaic.version = 11 : i64} {
  func.func @_mlp_kernel(%arg0: i32, %arg1: memref<8x5xf32, #tpu.memory_space<vmem>>, %arg2: memref<5x384xbf16, #tpu.memory_space<vmem>>, %arg3: memref<1x384xf32, #tpu.memory_space<vmem>>, %arg4: memref<384x256xbf16, #tpu.memory_space<vmem>>, %arg5: memref<1x256xf32, #tpu.memory_space<vmem>>, %arg6: memref<256x256xbf16, #tpu.memory_space<vmem>>, %arg7: memref<1x256xf32, #tpu.memory_space<vmem>>, %arg8: memref<256x128xbf16, #tpu.memory_space<vmem>>, %arg9: memref<1x128xf32, #tpu.memory_space<vmem>>, %arg10: memref<128x128xbf16, #tpu.memory_space<vmem>>, %arg11: memref<1x128xf32, #tpu.memory_space<vmem>>, %arg12: memref<8x128xf32, #tpu.memory_space<vmem>>) attributes {dimension_semantics = [#tpu.dimension_semantics<parallel>], iteration_bounds = array<i64: 1>, scalar_prefetch = 0 : i64, scratch_operands = 0 : i64, tpu.core_type = #tpu.core_type<tc>, window_params = [{transform_indices = @transform_0, window_bounds = array<i64: 8, 5>}, {pipeline_mode = #tpu.pipeline_mode<synchronous>, transform_indices = @transform_1, window_bounds = array<i64: 5, 384>}, {pipeline_mode = #tpu.pipeline_mode<synchronous>, transform_indices = @transform_2, window_bounds = array<i64: 1, 384>}, {pipeline_mode = #tpu.pipeline_mode<synchronous>, transform_indices = @transform_3, window_bounds = array<i64: 384, 256>}, {pipeline_mode = #tpu.pipeline_mode<synchronous>, transform_indices = @transform_4, window_bounds = array<i64: 1, 256>}, {pipeline_mode = #tpu.pipeline_mode<synchronous>, transform_indices = @transform_5, window_bounds = array<i64: 256, 256>}, {pipeline_mode = #tpu.pipeline_mode<synchronous>, transform_indices = @transform_6, window_bounds = array<i64: 1, 256>}, {pipeline_mode = #tpu.pipeline_mode<synchronous>, transform_indices = @transform_7, window_bounds = array<i64: 256, 128>}, {pipeline_mode = #tpu.pipeline_mode<synchronous>, transform_indices = @transform_8, window_bounds = array<i64: 1, 128>}, {pipeline_mode = #tpu.pipeline_mode<synchronous>, transform_indices = @transform_9, window_bounds = array<i64: 128, 128>}, {pipeline_mode = #tpu.pipeline_mode<synchronous>, transform_indices = @transform_10, window_bounds = array<i64: 1, 128>}, {transform_indices = @transform_11, window_bounds = array<i64: 8, 128>}]} {
    %c0 = arith.constant 0 : index
    %c0_0 = arith.constant 0 : index
    %0 = vector.load %arg1[%c0, %c0_0] : memref<8x5xf32, #tpu.memory_space<vmem>>, vector<8x5xf32>
    %1 = arith.truncf %0 : vector<8x5xf32> to vector<8x5xbf16>
    %c0_1 = arith.constant 0 : index
    %c0_2 = arith.constant 0 : index
    %2 = vector.load %arg2[%c0_1, %c0_2] : memref<5x384xbf16, #tpu.memory_space<vmem>>, vector<5x384xbf16>
    %cst = arith.constant dense<0.000000e+00> : vector<8x384xf32>
    %3 = tpu.matmul %1, %2, %cst {dimension_numbers = #tpu.dot_dimension_numbers<[1], [0], [0], [1], [0, 0, 1, 1], [], []>} : vector<8x5xbf16>, vector<5x384xbf16>, vector<8x384xf32> -> vector<8x384xf32>
    %c0_3 = arith.constant 0 : index
    %c0_4 = arith.constant 0 : index
    %4 = vector.load %arg3[%c0_3, %c0_4] : memref<1x384xf32, #tpu.memory_space<vmem>>, vector<1x384xf32>
    %5 = vector.broadcast %4 : vector<1x384xf32> to vector<8x384xf32>
    %6 = arith.addf %3, %5 : vector<8x384xf32>
    %cst_5 = arith.constant 0.000000e+00 : f32
    %7 = vector.broadcast %cst_5 : f32 to vector<8x384xf32>
    %8 = arith.maximumf %6, %7 : vector<8x384xf32>
    %9 = arith.truncf %8 : vector<8x384xf32> to vector<8x384xbf16>
    %c0_6 = arith.constant 0 : index
    %c0_7 = arith.constant 0 : index
    %10 = vector.load %arg4[%c0_6, %c0_7] : memref<384x256xbf16, #tpu.memory_space<vmem>>, vector<384x256xbf16>
    %cst_8 = arith.constant dense<0.000000e+00> : vector<8x256xf32>
    %11 = tpu.matmul %9, %10, %cst_8 {dimension_numbers = #tpu.dot_dimension_numbers<[1], [0], [0], [1], [0, 0, 1, 1], [], []>} : vector<8x384xbf16>, vector<384x256xbf16>, vector<8x256xf32> -> vector<8x256xf32>
    %c0_9 = arith.constant 0 : index
    %c0_10 = arith.constant 0 : index
    %12 = vector.load %arg5[%c0_9, %c0_10] : memref<1x256xf32, #tpu.memory_space<vmem>>, vector<1x256xf32>
    %13 = vector.broadcast %12 : vector<1x256xf32> to vector<8x256xf32>
    %14 = arith.addf %11, %13 : vector<8x256xf32>
    %cst_11 = arith.constant 0.000000e+00 : f32
    %15 = vector.broadcast %cst_11 : f32 to vector<8x256xf32>
    %16 = arith.maximumf %14, %15 : vector<8x256xf32>
    %17 = arith.truncf %16 : vector<8x256xf32> to vector<8x256xbf16>
    %c0_12 = arith.constant 0 : index
    %c0_13 = arith.constant 0 : index
    %18 = vector.load %arg6[%c0_12, %c0_13] : memref<256x256xbf16, #tpu.memory_space<vmem>>, vector<256x256xbf16>
    %cst_14 = arith.constant dense<0.000000e+00> : vector<8x256xf32>
    %19 = tpu.matmul %17, %18, %cst_14 {dimension_numbers = #tpu.dot_dimension_numbers<[1], [0], [0], [1], [0, 0, 1, 1], [], []>} : vector<8x256xbf16>, vector<256x256xbf16>, vector<8x256xf32> -> vector<8x256xf32>
    %c0_15 = arith.constant 0 : index
    %c0_16 = arith.constant 0 : index
    %20 = vector.load %arg7[%c0_15, %c0_16] : memref<1x256xf32, #tpu.memory_space<vmem>>, vector<1x256xf32>
    %21 = vector.broadcast %20 : vector<1x256xf32> to vector<8x256xf32>
    %22 = arith.addf %19, %21 : vector<8x256xf32>
    %cst_17 = arith.constant 0.000000e+00 : f32
    %23 = vector.broadcast %cst_17 : f32 to vector<8x256xf32>
    %24 = arith.maximumf %22, %23 : vector<8x256xf32>
    %25 = arith.truncf %24 : vector<8x256xf32> to vector<8x256xbf16>
    %c0_18 = arith.constant 0 : index
    %c0_19 = arith.constant 0 : index
    %26 = vector.load %arg8[%c0_18, %c0_19] : memref<256x128xbf16, #tpu.memory_space<vmem>>, vector<256x128xbf16>
    %cst_20 = arith.constant dense<0.000000e+00> : vector<8x128xf32>
    %27 = tpu.matmul %25, %26, %cst_20 {dimension_numbers = #tpu.dot_dimension_numbers<[1], [0], [0], [1], [0, 0, 1, 1], [], []>} : vector<8x256xbf16>, vector<256x128xbf16>, vector<8x128xf32> -> vector<8x128xf32>
    %c0_21 = arith.constant 0 : index
    %c0_22 = arith.constant 0 : index
    %28 = vector.load %arg9[%c0_21, %c0_22] : memref<1x128xf32, #tpu.memory_space<vmem>>, vector<1x128xf32>
    %29 = vector.broadcast %28 : vector<1x128xf32> to vector<8x128xf32>
    %30 = arith.addf %27, %29 : vector<8x128xf32>
    %cst_23 = arith.constant 0.000000e+00 : f32
    %31 = vector.broadcast %cst_23 : f32 to vector<8x128xf32>
    %32 = arith.maximumf %30, %31 : vector<8x128xf32>
    %33 = arith.truncf %32 : vector<8x128xf32> to vector<8x128xbf16>
    %c0_24 = arith.constant 0 : index
    %c0_25 = arith.constant 0 : index
    %34 = vector.load %arg10[%c0_24, %c0_25] : memref<128x128xbf16, #tpu.memory_space<vmem>>, vector<128x128xbf16>
    %cst_26 = arith.constant dense<0.000000e+00> : vector<8x128xf32>
    %35 = tpu.matmul %33, %34, %cst_26 {dimension_numbers = #tpu.dot_dimension_numbers<[1], [0], [0], [1], [0, 0, 1, 1], [], []>} : vector<8x128xbf16>, vector<128x128xbf16>, vector<8x128xf32> -> vector<8x128xf32>
    %c0_27 = arith.constant 0 : index
    %c0_28 = arith.constant 0 : index
    %36 = vector.load %arg11[%c0_27, %c0_28] : memref<1x128xf32, #tpu.memory_space<vmem>>, vector<1x128xf32>
    %37 = vector.broadcast %36 : vector<1x128xf32> to vector<8x128xf32>
    %38 = arith.addf %35, %37 : vector<8x128xf32>
    %c0_29 = arith.constant 0 : index
    %c0_30 = arith.constant 0 : index
    %39 = vector.load %arg12[%c0_29, %c0_30] : memref<8x128xf32, #tpu.memory_space<vmem>>, vector<8x128xf32>
    tpu.vector_store %arg12[%c0_29, %c0_30], %38 {strides = array<i32>} : memref<8x128xf32, #tpu.memory_space<vmem>>, vector<8x128xf32>,
    return
  }
  func.func @transform_0(%arg0: i32) -> (i32, i32) {
    %c0_i32 = arith.constant 0 : i32
    %c0_i32_0 = arith.constant 0 : i32
    return %arg0, %c0_i32 : i32, i32
  }
  func.func @transform_1(%arg0: i32) -> (i32, i32) {
    %c0_i32 = arith.constant 0 : i32
    %c0_i32_0 = arith.constant 0 : i32
    %c0_i32_1 = arith.constant 0 : i32
    return %c0_i32, %c0_i32_0 : i32, i32
  }
  func.func @transform_2(%arg0: i32) -> (i32, i32) {
    %c0_i32 = arith.constant 0 : i32
    %c0_i32_0 = arith.constant 0 : i32
    %c0_i32_1 = arith.constant 0 : i32
    return %c0_i32, %c0_i32_0 : i32, i32
  }
  func.func @transform_3(%arg0: i32) -> (i32, i32) {
    %c0_i32 = arith.constant 0 : i32
    %c0_i32_0 = arith.constant 0 : i32
    %c0_i32_1 = arith.constant 0 : i32
    return %c0_i32, %c0_i32_0 : i32, i32
  }
  func.func @transform_4(%arg0: i32) -> (i32, i32) {
    %c0_i32 = arith.constant 0 : i32
    %c0_i32_0 = arith.constant 0 : i32
    %c0_i32_1 = arith.constant 0 : i32
    return %c0_i32, %c0_i32_0 : i32, i32
  }
  func.func @transform_5(%arg0: i32) -> (i32, i32) {
    %c0_i32 = arith.constant 0 : i32
    %c0_i32_0 = arith.constant 0 : i32
    %c0_i32_1 = arith.constant 0 : i32
    return %c0_i32, %c0_i32_0 : i32, i32
  }
  func.func @transform_6(%arg0: i32) -> (i32, i32) {
    %c0_i32 = arith.constant 0 : i32
    %c0_i32_0 = arith.constant 0 : i32
    %c0_i32_1 = arith.constant 0 : i32
    return %c0_i32, %c0_i32_0 : i32, i32
  }
  func.func @transform_7(%arg0: i32) -> (i32, i32) {
    %c0_i32 = arith.constant 0 : i32
    %c0_i32_0 = arith.constant 0 : i32
    %c0_i32_1 = arith.constant 0 : i32
    return %c0_i32, %c0_i32_0 : i32, i32
  }
  func.func @transform_8(%arg0: i32) -> (i32, i32) {
    %c0_i32 = arith.constant 0 : i32
    %c0_i32_0 = arith.constant 0 : i32
    %c0_i32_1 = arith.constant 0 : i32
    return %c0_i32, %c0_i32_0 : i32, i32
  }
  func.func @transform_9(%arg0: i32) -> (i32, i32) {
    %c0_i32 = arith.constant 0 : i32
    %c0_i32_0 = arith.constant 0 : i32
    %c0_i32_1 = arith.constant 0 : i32
    return %c0_i32, %c0_i32_0 : i32, i32
  }
  func.func @transform_10(%arg0: i32) -> (i32, i32) {
    %c0_i32 = arith.constant 0 : i32
    %c0_i32_0 = arith.constant 0 : i32
    %c0_i32_1 = arith.constant 0 : i32
    return %c0_i32, %c0_i32_0 : i32, i32
  }
  func.func @transform_11(%arg0: i32) -> (i32, i32) {
    %c0_i32 = arith.constant 0 : i32
    %c0_i32_0 = arith.constant 0 : i32
    return %arg0, %c0_i32 : i32, i32
  }
}

</mosaic_0001>

<llo_original>
// kernel: tpu_custom_call.1
$region0: #{tpu_custom_call.1}
  #allocation0 [shape = 'u32[]', space=smem, size = 0x4, offset = 0x4, fixed_abs, tag = 'smem constant byte address 0x4 - core index']
  #allocation1 [shape = 'u32[144,128]{1,0:T(1,128)}', space=vmem, size = 0x12000, scoped, tag = 'internal scratch']
  %s0 = inlined_call_operand.hbm [shape: f32[8,5], index: 0, kind: input, shape index: {}]
  %s1 = inlined_call_operand.hbm [shape: bf16[5,384], index: 1, kind: input, shape index: {}]
  %s2 = inlined_call_operand.vmem [shape: f32[1,384], index: 2, kind: input, shape index: {}]
  %s3 = inlined_call_operand.hbm [shape: bf16[384,256], index: 3, kind: input, shape index: {}]
  %s4 = inlined_call_operand.vmem [shape: f32[1,256], index: 4, kind: input, shape index: {}]
  %s5 = inlined_call_operand.hbm [shape: bf16[256,256], index: 5, kind: input, shape index: {}]
  %s6 = inlined_call_operand.vmem [shape: f32[1,256], index: 6, kind: input, shape index: {}]
  %s7 = inlined_call_operand.hbm [shape: bf16[256,128], index: 7, kind: input, shape index: {}]
  %s8 = inlined_call_operand.vmem [shape: f32[1,128], index: 8, kind: input, shape index: {}]
  %s9 = inlined_call_operand.hbm [shape: bf16[128,128], index: 9, kind: input, shape index: {}]
  %s10 = inlined_call_operand.vmem [shape: f32[1,128], index: 10, kind: input, shape index: {}]
  %s11 = inlined_call_operand.hbm [shape: f32[8,128], index: 11, kind: output, shape index: {}]
  %s12 = sld [smem:[#allocation0]]
  $region78: #{tpu_custom_call.1} parent=0
    _
  %s14 = ssub.s32 1, %s12
  %s15 = scalar_select 0, %s14, %s12
  $region1: #{tpu_custom_call.1} parent=0
    #allocation2 [shape = 'u8[4096]{0}', space=vmem, size = 0x1000, scoped, tag = 'input window, operand 0, single buffered']
    #allocation3 [shape = 's32[1]{0}', space=sflag, size = 0x4, scoped, tag = 'scoped memory for tpu_custom_call.1']
    #allocation4 [shape = 's32[1]{0}', space=sflag, size = 0x4, scoped, tag = 'scoped memory for tpu_custom_call.1']
    #allocation5 [shape = 'u8[6144]{0}', space=vmem, size = 0x1800, scoped, tag = 'input window, operand 1, single buffered']
    #allocation6 [shape = 's32[1]{0}', space=sflag, size = 0x4, scoped, tag = 'scoped memory for tpu_custom_call.1']
    #allocation7 [shape = 'u8[196608]{0}', space=vmem, size = 0x30000, scoped, tag = 'input window, operand 3, single buffered']
    #allocation8 [shape = 'u8[131072]{0}', space=vmem, size = 0x20000, scoped, tag = 'input window, operand 5, single buffered']
    #allocation9 [shape = 's32[1]{0}', space=sflag, size = 0x4, scoped, tag = 'scoped memory for tpu_custom_call.1']
    #allocation10 [shape = 'u8[65536]{0}', space=vmem, size = 0x10000, scoped, tag = 'input window, operand 7, single buffered']
    #allocation11 [shape = 'u8[32768]{0}', space=vmem, size = 0x8000, scoped, tag = 'input window, operand 9, single buffered']
    #allocation12 [shape = 's32[1]{0}', space=sflag, size = 0x4, scoped, tag = 'scoped memory for tpu_custom_call.1']
    #allocation13 [shape = 'u8[4096]{0}', space=vmem, size = 0x1000, scoped, tag = 'output window, operand 0, single buffered']
    %16 = vsyncpa [#allocation3], 0
    %17 = vsyncpa [#allocation6], 0
    %18 = vsyncpa [#allocation9], 0
    %19 = vsyncpa [#allocation12], 0
    %20 = vsyncpa [#allocation4], 0
    // Predicated region
    $region2: #{tpu_custom_call.1} parent=1 // pred_check
      _
    $region3: #{tpu_custom_call.1} parent=1 // pred_check_branch
      %22 = sbr.rel (0) target = $region5
    $region4: #{tpu_custom_call.1} parent=1 // pred_region
      %s24 = ssub.s32 128, 128
      %25 = vsyncadd [#allocation3], %s24
      %s27 = sshll.u32 [#allocation2], 4
      %s28 = int_to_ptr.vmem [resolvable:$true] %s27
      %30 = dma.hbm_to_vmem [thread:$0]  %s0, 128, %s28, [#allocation3]
    $region5: #{tpu_custom_call.1} parent=1 // pred_fallthru
      _
    // Predicated region
    $region6: #{tpu_custom_call.1} parent=1 // pred_check
      _
    $region7: #{tpu_custom_call.1} parent=1 // pred_check_branch
      %32 = sbr.rel (0) target = $region9
    $region8: #{tpu_custom_call.1} parent=1 // pred_region
      %s34 = ssub.s32 192, 192
      %35 = vsyncadd [#allocation6], %s34
      %s37 = sshll.u32 [#allocation5], 4
      %s38 = int_to_ptr.vmem [resolvable:$true] %s37
      %40 = dma.hbm_to_vmem [thread:$0]  %s1, 192, %s38, [#allocation6]
    $region9: #{tpu_custom_call.1} parent=1 // pred_fallthru
      _
    // Predicated region
    $region10: #{tpu_custom_call.1} parent=1 // pred_check
      _
    $region11: #{tpu_custom_call.1} parent=1 // pred_check_branch
      %42 = sbr.rel (0) target = $region13
    $region12: #{tpu_custom_call.1} parent=1 // pred_region
      _
    $region13: #{tpu_custom_call.1} parent=1 // pred_fallthru
      _
    // Predicated region
    $region14: #{tpu_custom_call.1} parent=1 // pred_check
      _
    $region15: #{tpu_custom_call.1} parent=1 // pred_check_branch
      %44 = sbr.rel (0) target = $region17
    $region16: #{tpu_custom_call.1} parent=1 // pred_region
      %s46 = ssub.s32 6144, 6144
      %47 = vsyncadd [#allocation6], %s46
      %s48 = sshll.u32 [#allocation7], 4
      %s49 = int_to_ptr.vmem [resolvable:$true] %s48
      %54 = dma.hbm_to_vmem [thread:$0]  %s3, 6144, %s49, [#allocation6], 128, 128, 8
    $region17: #{tpu_custom_call.1} parent=1 // pred_fallthru
      _
    // Predicated region
    $region18: #{tpu_custom_call.1} parent=1 // pred_check
      _
    $region19: #{tpu_custom_call.1} parent=1 // pred_check_branch
      %56 = sbr.rel (0) target = $region21
    $region20: #{tpu_custom_call.1} parent=1 // pred_region
      _
    $region21: #{tpu_custom_call.1} parent=1 // pred_fallthru
      _
    // Predicated region
    $region22: #{tpu_custom_call.1} parent=1 // pred_check
      _
    $region23: #{tpu_custom_call.1} parent=1 // pred_check_branch
      %58 = sbr.rel (0) target = $region25
    $region24: #{tpu_custom_call.1} parent=1 // pred_region
      %s60 = ssub.s32 4096, 4096
      %61 = vsyncadd [#allocation9], %s60
      %s62 = sshll.u32 [#allocation8], 4
      %s63 = int_to_ptr.vmem [resolvable:$true] %s62
      %68 = dma.hbm_to_vmem [thread:$0]  %s5, 4096, %s63, [#allocation9], 128, 128, 8
    $region25: #{tpu_custom_call.1} parent=1 // pred_fallthru
      _
    // Predicated region
    $region26: #{tpu_custom_call.1} parent=1 // pred_check
      _
    $region27: #{tpu_custom_call.1} parent=1 // pred_check_branch
      %70 = sbr.rel (0) target = $region29
    $region28: #{tpu_custom_call.1} parent=1 // pred_region
      _
    $region29: #{tpu_custom_call.1} parent=1 // pred_fallthru
      _
    // Predicated region
    $region30: #{tpu_custom_call.1} parent=1 // pred_check
      _
    $region31: #{tpu_custom_call.1} parent=1 // pred_check_branch
      %72 = sbr.rel (0) target = $region33
    $region32: #{tpu_custom_call.1} parent=1 // pred_region
      %s74 = ssub.s32 2048, 2048
      %75 = vsyncadd [#allocation9], %s74
      %s76 = sshll.u32 [#allocation10], 4
      %s77 = int_to_ptr.vmem [resolvable:$true] %s76
      %82 = dma.hbm_to_vmem [thread:$0]  %s7, 2048, %s77, [#allocation9], 64, 64, 4
    $region33: #{tpu_custom_call.1} parent=1 // pred_fallthru
      _
    // Predicated region
    $region34: #{tpu_custom_call.1} parent=1 // pred_check
      _
    $region35: #{tpu_custom_call.1} parent=1 // pred_check_branch
      %84 = sbr.rel (0) target = $region37
    $region36: #{tpu_custom_call.1} parent=1 // pred_region
      _
    $region37: #{tpu_custom_call.1} parent=1 // pred_fallthru
      _
    // Predicated region
    $region38: #{tpu_custom_call.1} parent=1 // pred_check
      _
    $region39: #{tpu_custom_call.1} parent=1 // pred_check_branch
      %86 = sbr.rel (0) target = $region41
    $region40: #{tpu_custom_call.1} parent=1 // pred_region
      %s88 = ssub.s32 1024, 1024
      %89 = vsyncadd [#allocation12], %s88
      %s90 = sshll.u32 [#allocation11], 4
      %s91 = int_to_ptr.vmem [resolvable:$true] %s90
      %96 = dma.hbm_to_vmem [thread:$0]  %s9, 1024, %s91, [#allocation12], 64, 64, 4
    $region41: #{tpu_custom_call.1} parent=1 // pred_fallthru
      _
    // Predicated region
    $region42: #{tpu_custom_call.1} parent=1 // pred_check
      _
    $region43: #{tpu_custom_call.1} parent=1 // pred_check_branch
      %98 = sbr.rel (0) target = $region45
    $region44: #{tpu_custom_call.1} parent=1 // pred_region
      _
    $region45: #{tpu_custom_call.1} parent=1 // pred_fallthru
      _
    // Predicated region
    $region46: #{tpu_custom_call.1} parent=1 // pred_check
      _
    $region47: #{tpu_custom_call.1} parent=1 // pred_check_branch
      %100 = sbr.rel (0) target = $region49
    $region48: #{tpu_custom_call.1} parent=1 // pred_region
      %101 = dma.done [#allocation3], 128
    $region49: #{tpu_custom_call.1} parent=1 // pred_fallthru
      _
    // Predicated region
    $region50: #{tpu_custom_call.1} parent=1 // pred_check
      _
    $region51: #{tpu_custom_call.1} parent=1 // pred_check_branch
      %103 = sbr.rel (0) target = $region53
    $region52: #{tpu_custom_call.1} parent=1 // pred_region
      %104 = dma.done [#allocation6], 192
    $region53: #{tpu_custom_call.1} parent=1 // pred_fallthru
      _
    // Predicated region
    $region54: #{tpu_custom_call.1} parent=1 // pred_check
      _
    $region55: #{tpu_custom_call.1} parent=1 // pred_check_branch
      %106 = sbr.rel (0) target = $region57
    $region56: #{tpu_custom_call.1} parent=1 // pred_region
      %107 = dma.done [#allocation6], 6144
    $region57: #{tpu_custom_call.1} parent=1 // pred_fallthru
      _
    // Predicated region
    $region58: #{tpu_custom_call.1} parent=1 // pred_check
      _
    $region59: #{tpu_custom_call.1} parent=1 // pred_check_branch
      %109 = sbr.rel (0) target = $region61
    $region60: #{tpu_custom_call.1} parent=1 // pred_region
      %110 = dma.done [#allocation9], 4096
    $region61: #{tpu_custom_call.1} parent=1 // pred_fallthru
      _
    // Predicated region
    $region62: #{tpu_custom_call.1} parent=1 // pred_check
      _
    $region63: #{tpu_custom_call.1} parent=1 // pred_check_branch
      %112 = sbr.rel (0) target = $region65
    $region64: #{tpu_custom_call.1} parent=1 // pred_region
      %113 = dma.done [#allocation9], 2048
    $region65: #{tpu_custom_call.1} parent=1 // pred_fallthru
      _
    // Predicated region
    $region66: #{tpu_custom_call.1} parent=1 // pred_check
      _
    $region67: #{tpu_custom_call.1} parent=1 // pred_check_branch
      %115 = sbr.rel (0) target = $region69
    $region68: #{tpu_custom_call.1} parent=1 // pred_region
      %116 = dma.done [#allocation12], 1024
    $region69: #{tpu_custom_call.1} parent=1 // pred_fallthru
      _
    %v118 = vld [vmem:[#allocation2] sm:$0xff]
    %v119 = vpack.c.bf16 %v118, %v118
    %v120 = vld [vmem:[#allocation5] sm:$0x77]
    %v121 = vld [vmem:[#allocation5 + $0x8] sm:$0x7]
    %v122 = vld [vmem:[%s2] sm:$0x7]
    %v124 = vlaneseq
    %v125 = vshrl.u32 %v124, 7
    %v126 = vsub.s32 0, %v125
    %v127 = vrot.slane %v122, %v126
    %v128 = vlaneseq
    %v129 = vshrl.u32 %v128, 7
    %v130 = vsub.s32 1, %v129
    %v131 = vrot.slane %v122, %v130
    %v132 = vlaneseq
    %v133 = vshrl.u32 %v132, 7
    %v134 = vsub.s32 2, %v133
    %v135 = vrot.slane %v122, %v134
    %v141 = vunpack.c.l.b16 %v120
    %v142 = vunpack.c.h.b16 %v120
    %v143 = vunpack.c.l.b16 %v121
    %v144 = vpack.c.b16 %v141, %v141
    %v145 = vpack.c.b16 %v142, %v142
    %v146 = vpack.c.b16 %v143, %v143
    %vm147 = vcmask 39936
    %v149 = vsel %vm147, %v119, 0
    %vm151 = vcmask 1041408
    %vm152 = vcmask 1042432
    %v153 = vsel %vm151, 4294967295, 65535
    %v154 = vsel %vm152, %v153, 0
    %v156 = vand.u32 %v144, %v154
    %v159 = vand.u32 %v145, %v154
    %v162 = vand.u32 %v146, %v154
    %164 = vmatprep.subr.bf16.mxu0 %v159
    %165 = vmatpush1.bf16.msra.mxu0 %v156
    %166 = vmatprep.subr.bf16.mxu0 0
    %167 = vmatpush1.bf16.msra.mxu0 0
    %168 = vmatprep.subr.bf16.mxu0 0
    %169 = vmatpush1.bf16.msra.mxu0 0
    %170 = vmatprep.subr.bf16.mxu0 0
    %171 = vmatpush1.bf16.msra.mxu0 0
    %172 = vmatprep.subr.bf16.mxu0 0
    %173 = vmatpush1.bf16.msra.mxu0 0
    %174 = vmatprep.subr.bf16.mxu0 0
    %175 = vmatpush1.bf16.msra.mxu0 0
    %176 = vmatprep.subr.bf16.mxu0 0
    %177 = vmatpush1.bf16.msra.mxu0 0
    %178 = vmatprep.subr.bf16.mxu0 0
    %179 = vmatpush1.bf16.msra.mxu0 0
    %180 = vmatprep.subr.bf16.mxu0 0
    %181 = vmatpush1.bf16.msra.mxu0 0
    %182 = vmatprep.subr.bf16.mxu0 0
    %183 = vmatpush1.bf16.msra.mxu0 0
    %184 = vmatprep.subr.bf16.mxu0 0
    %185 = vmatpush1.bf16.msra.mxu0 0
    %186 = vmatprep.subr.bf16.mxu0 0
    %187 = vmatpush1.bf16.msra.mxu0 0
    %188 = vmatprep.subr.bf16.mxu0 0
    %189 = vmatpush1.bf16.msra.mxu0 0
    %190 = vmatprep.subr.bf16.mxu0 0
    %191 = vmatpush1.bf16.msra.mxu0 0
    %192 = vmatprep.subr.bf16.mxu0 0
    %193 = vmatpush1.bf16.msra.mxu0 0
    %194 = vmatprep.subr.bf16.mxu0 0
    %195 = vmatpush1.bf16.msra.mxu0 0
    %196 = vmatprep.mubr.bf16.mxu0 0
    %197 = vmatmul.mubr.bf16.gmra.mrb[0].mxu0 %v149
    %v198 = vpop.f32.mrb[0].mxu0
    %v199 = vadd.f32 %v127, %v198
    %v200 = vpop.f32.mrb[0].mxu0
    %v201 = vadd.f32 %v131, %v200
    %v202 = vpop.f32.mrb[0].mxu0
    %v203 = vpop.f32.mrb[0].mxu0
    %204 = vdwg.mxu0
    %205 = vmatprep.subr.bf16.mxu0 0
    %206 = vmatpush1.bf16.msra.mxu0 %v162
    %207 = vmatprep.subr.bf16.mxu0 0
    %208 = vmatpush1.bf16.msra.mxu0 0
    %209 = vmatprep.subr.bf16.mxu0 0
    %210 = vmatpush1.bf16.msra.mxu0 0
    %211 = vmatprep.subr.bf16.mxu0 0
    %212 = vmatpush1.bf16.msra.mxu0 0
    %213 = vmatprep.subr.bf16.mxu0 0
    %214 = vmatpush1.bf16.msra.mxu0 0
    %215 = vmatprep.subr.bf16.mxu0 0
    %216 = vmatpush1.bf16.msra.mxu0 0
    %217 = vmatprep.subr.bf16.mxu0 0
    %218 = vmatpush1.bf16.msra.mxu0 0
    %219 = vmatprep.subr.bf16.mxu0 0
    %220 = vmatpush1.bf16.msra.mxu0 0
    %221 = vmatprep.subr.bf16.mxu0 0
    %222 = vmatpush1.bf16.msra.mxu0 0
    %223 = vmatprep.subr.bf16.mxu0 0
    %224 = vmatpush1.bf16.msra.mxu0 0
    %225 = vmatprep.subr.bf16.mxu0 0
    %226 = vmatpush1.bf16.msra.mxu0 0
    %227 = vmatprep.subr.bf16.mxu0 0
    %228 = vmatpush1.bf16.msra.mxu0 0
    %229 = vmatprep.subr.bf16.mxu0 0
    %230 = vmatpush1.bf16.msra.mxu0 0
    %231 = vmatprep.subr.bf16.mxu0 0
    %232 = vmatpush1.bf16.msra.mxu0 0
    %233 = vmatprep.subr.bf16.mxu0 0
    %234 = vmatpush1.bf16.msra.mxu0 0
    %235 = vmatprep.subr.bf16.mxu0 0
    %236 = vmatpush1.bf16.msra.mxu0 0
    %237 = vmatprep.mubr.bf16.mxu0 0
    %238 = vmatmul.mubr.bf16.gmra.mrb[0].mxu0 %v149
    %v239 = vpop.f32.mrb[0].mxu0
    %v240 = vadd.f32 %v135, %v239
    %v241 = vpop.f32.mrb[0].mxu0
    %v242 = vpop.f32.mrb[0].mxu0
    %v243 = vpop.f32.mrb[0].mxu0
    %244 = vdwg.mxu0
    %v245 = vmax.f32 %v199, 0.0
    %v246 = vmax.f32 %v201, 0.0
    %v247 = vmax.f32 %v240, 0.0
    %v248 = vpack.c.bf16 %v245, %v245
    %v249 = vpack.c.bf16 %v246, %v246
    %v250 = vpack.c.bf16 %v247, %v247
    %v251 = vld [vmem:[#allocation7] sm:$0xff]
    %v252 = vld [vmem:[#allocation7 + $0x8] sm:$0xff]
    %v253 = vld [vmem:[#allocation7 + $0x10] sm:$0xff]
    %v254 = vld [vmem:[#allocation7 + $0x18] sm:$0xff]
    %v255 = vld [vmem:[#allocation7 + $0x20] sm:$0xff]
    %v256 = vld [vmem:[#allocation7 + $0x28] sm:$0xff]
    %v257 = vld [vmem:[#allocation7 + $0x30] sm:$0xff]
    %v258 = vld [vmem:[#allocation7 + $0x38] sm:$0xff]
    %v259 = vld [vmem:[#allocation7 + $0x40] sm:$0xff]
    %v260 = vld [vmem:[#allocation7 + $0x48] sm:$0xff]
    %v261 = vld [vmem:[#allocation7 + $0x50] sm:$0xff]
    %v262 = vld [vmem:[#allocation7 + $0x58] sm:$0xff]
    %v263 = vld [vmem:[#allocation7 + $0x60] sm:$0xff]
    %v264 = vld [vmem:[#allocation7 + $0x68] sm:$0xff]
    %v265 = vld [vmem:[#allocation7 + $0x70] sm:$0xff]
    %v266 = vld [vmem:[#allocation7 + $0x78] sm:$0xff]
    %v267 = vld [vmem:[#allocation7 + $0x80] sm:$0xff]
    %v268 = vld [vmem:[#allocation7 + $0x88] sm:$0xff]
    %v269 = vld [vmem:[#allocation7 + $0x90] sm:$0xff]
    %v270 = vld [vmem:[#allocation7 + $0x98] sm:$0xff]
    %v271 = vld [vmem:[#allocation7 + $0xa0] sm:$0xff]
    %v272 = vld [vmem:[#allocation7 + $0xa8] sm:$0xff]
    %v273 = vld [vmem:[#allocation7 + $0xb0] sm:$0xff]
    %v274 = vld [vmem:[#allocation7 + $0xb8] sm:$0xff]
    %v275 = vld [vmem:[#allocation7 + $0xc0] sm:$0xff]
    %v276 = vld [vmem:[#allocation7 + $0xc8] sm:$0xff]
    %v277 = vld [vmem:[#allocation7 + $0xd0] sm:$0xff]
    %v278 = vld [vmem:[#allocation7 + $0xd8] sm:$0xff]
    %v279 = vld [vmem:[#allocation7 + $0xe0] sm:$0xff]
    %v280 = vld [vmem:[#allocation7 + $0xe8] sm:$0xff]
    %v281 = vld [vmem:[#allocation7 + $0xf0] sm:$0xff]
    %v282 = vld [vmem:[#allocation7 + $0xf8] sm:$0xff]
    %v283 = vld [vmem:[#allocation7 + $0x100] sm:$0xff]
    %v284 = vld [vmem:[#allocation7 + $0x108] sm:$0xff]
    %v285 = vld [vmem:[#allocation7 + $0x110] sm:$0xff]
    %v286 = vld [vmem:[#allocation7 + $0x118] sm:$0xff]
    %v287 = vld [vmem:[#allocation7 + $0x120] sm:$0xff]
    %v288 = vld [vmem:[#allocation7 + $0x128] sm:$0xff]
    %v289 = vld [vmem:[#allocation7 + $0x130] sm:$0xff]
    %v290 = vld [vmem:[#allocation7 + $0x138] sm:$0xff]
    %v291 = vld [vmem:[#allocation7 + $0x140] sm:$0xff]
    %v292 = vld [vmem:[#allocation7 + $0x148] sm:$0xff]
    %v293 = vld [vmem:[#allocation7 + $0x150] sm:$0xff]
    %v294 = vld [vmem:[#allocation7 + $0x158] sm:$0xff]
    %v295 = vld [vmem:[#allocation7 + $0x160] sm:$0xff]
    %v296 = vld [vmem:[#allocation7 + $0x168] sm:$0xff]
    %v297 = vld [vmem:[#allocation7 + $0x170] sm:$0xff]
    %v298 = vld [vmem:[#allocation7 + $0x178] sm:$0xff]
    %v299 = vld [vmem:[%s4] sm:$0x3]
    %v301 = vlaneseq
    %v302 = vshrl.u32 %v301, 7
    %v303 = vsub.s32 0, %v302
    %v304 = vrot.slane %v299, %v303
    %v305 = vlaneseq
    %v306 = vshrl.u32 %v305, 7
    %v307 = vsub.s32 1, %v306
    %v308 = vrot.slane %v299, %v307
    %v359 = vunpack.c.l.b16 %v251
    %v360 = vunpack.c.h.b16 %v251
    %v361 = vunpack.c.l.b16 %v252
    %v362 = vunpack.c.h.b16 %v252
    %v363 = vunpack.c.l.b16 %v253
    %v364 = vunpack.c.h.b16 %v253
    %v365 = vunpack.c.l.b16 %v254
    %v366 = vunpack.c.h.b16 %v254
    %v367 = vunpack.c.l.b16 %v255
    %v368 = vunpack.c.h.b16 %v255
    %v369 = vunpack.c.l.b16 %v256
    %v370 = vunpack.c.h.b16 %v256
    %v371 = vunpack.c.l.b16 %v257
    %v372 = vunpack.c.h.b16 %v257
    %v373 = vunpack.c.l.b16 %v258
    %v374 = vunpack.c.h.b16 %v258
    %v375 = vunpack.c.l.b16 %v259
    %v376 = vunpack.c.h.b16 %v259
    %v377 = vunpack.c.l.b16 %v260
    %v378 = vunpack.c.h.b16 %v260
    %v379 = vunpack.c.l.b16 %v261
    %v380 = vunpack.c.h.b16 %v261
    %v381 = vunpack.c.l.b16 %v262
    %v382 = vunpack.c.h.b16 %v262
    %v383 = vunpack.c.l.b16 %v263
    %v384 = vunpack.c.h.b16 %v263
    %v385 = vunpack.c.l.b16 %v264
    %v386 = vunpack.c.h.b16 %v264
    %v387 = vunpack.c.l.b16 %v265
    %v388 = vunpack.c.h.b16 %v265
    %v389 = vunpack.c.l.b16 %v266
    %v390 = vunpack.c.h.b16 %v266
    %v391 = vunpack.c.l.b16 %v267
    %v392 = vunpack.c.h.b16 %v267
    %v393 = vunpack.c.l.b16 %v268
    %v394 = vunpack.c.h.b16 %v268
    %v395 = vunpack.c.l.b16 %v269
    %v396 = vunpack.c.h.b16 %v269
    %v397 = vunpack.c.l.b16 %v270
    %v398 = vunpack.c.h.b16 %v270
    %v399 = vunpack.c.l.b16 %v271
    %v400 = vunpack.c.h.b16 %v271
    %v401 = vunpack.c.l.b16 %v272
    %v402 = vunpack.c.h.b16 %v272
    %v403 = vunpack.c.l.b16 %v273
    %v404 = vunpack.c.h.b16 %v273
    %v405 = vunpack.c.l.b16 %v274
    %v406 = vunpack.c.h.b16 %v274
    %v407 = vunpack.c.l.b16 %v275
    %v408 = vunpack.c.h.b16 %v275
    %v409 = vunpack.c.l.b16 %v276
    %v410 = vunpack.c.h.b16 %v276
    %v411 = vunpack.c.l.b16 %v277
    %v412 = vunpack.c.h.b16 %v277
    %v413 = vunpack.c.l.b16 %v278
    %v414 = vunpack.c.h.b16 %v278
    %v415 = vunpack.c.l.b16 %v279
    %v416 = vunpack.c.h.b16 %v279
    %v417 = vunpack.c.l.b16 %v280
    %v418 = vunpack.c.h.b16 %v280
    %v419 = vunpack.c.l.b16 %v281
    %v420 = vunpack.c.h.b16 %v281
    %v421 = vunpack.c.l.b16 %v282
    %v422 = vunpack.c.h.b16 %v282
    %v423 = vunpack.c.l.b16 %v283
    %v424 = vunpack.c.h.b16 %v283
    %v425 = vunpack.c.l.b16 %v284
    %v426 = vunpack.c.h.b16 %v284
    %v427 = vunpack.c.l.b16 %v285
    %v428 = vunpack.c.h.b16 %v285
    %v429 = vunpack.c.l.b16 %v286
    %v430 = vunpack.c.h.b16 %v286
    %v431 = vunpack.c.l.b16 %v287
    %v432 = vunpack.c.h.b16 %v287
    %v433 = vunpack.c.l.b16 %v288
    %v434 = vunpack.c.h.b16 %v288
    %v435 = vunpack.c.l.b16 %v289
    %v436 = vunpack.c.h.b16 %v289
    %v437 = vunpack.c.l.b16 %v290
    %v438 = vunpack.c.h.b16 %v290
    %v439 = vunpack.c.l.b16 %v291
    %v440 = vunpack.c.h.b16 %v291
    %v441 = vunpack.c.l.b16 %v292
    %v442 = vunpack.c.h.b16 %v292
    %v443 = vunpack.c.l.b16 %v293
    %v444 = vunpack.c.h.b16 %v293
    %v445 = vunpack.c.l.b16 %v294
    %v446 = vunpack.c.h.b16 %v294
    %v447 = vunpack.c.l.b16 %v295
    %v448 = vunpack.c.h.b16 %v295
    %v449 = vunpack.c.l.b16 %v296
    %v450 = vunpack.c.h.b16 %v296
    %v451 = vunpack.c.l.b16 %v297
    %v452 = vunpack.c.h.b16 %v297
    %v453 = vunpack.c.l.b16 %v298
    %v454 = vunpack.c.h.b16 %v298
    %v455 = vpack.c.b16 %v361, %v359
    %v456 = vpack.c.b16 %v362, %v360
    %v457 = vpack.c.b16 %v365, %v363
    %v458 = vpack.c.b16 %v366, %v364
    %v459 = vpack.c.b16 %v369, %v367
    %v460 = vpack.c.b16 %v370, %v368
    %v461 = vpack.c.b16 %v373, %v371
    %v462 = vpack.c.b16 %v374, %v372
    %v463 = vpack.c.b16 %v377, %v375
    %v464 = vpack.c.b16 %v378, %v376
    %v465 = vpack.c.b16 %v381, %v379
    %v466 = vpack.c.b16 %v382, %v380
    %v467 = vpack.c.b16 %v385, %v383
    %v468 = vpack.c.b16 %v386, %v384
    %v469 = vpack.c.b16 %v389, %v387
    %v470 = vpack.c.b16 %v390, %v388
    %v471 = vpack.c.b16 %v393, %v391
    %v472 = vpack.c.b16 %v394, %v392
    %v473 = vpack.c.b16 %v397, %v395
    %v474 = vpack.c.b16 %v398, %v396
    %v475 = vpack.c.b16 %v401, %v399
    %v476 = vpack.c.b16 %v402, %v400
    %v477 = vpack.c.b16 %v405, %v403
    %v478 = vpack.c.b16 %v406, %v404
    %v479 = vpack.c.b16 %v409, %v407
    %v480 = vpack.c.b16 %v410, %v408
    %v481 = vpack.c.b16 %v413, %v411
    %v482 = vpack.c.b16 %v414, %v412
    %v483 = vpack.c.b16 %v417, %v415
    %v484 = vpack.c.b16 %v418, %v416
    %v485 = vpack.c.b16 %v421, %v419
    %v486 = vpack.c.b16 %v422, %v420
    %v487 = vpack.c.b16 %v425, %v423
    %v488 = vpack.c.b16 %v426, %v424
    %v489 = vpack.c.b16 %v429, %v427
    %v490 = vpack.c.b16 %v430, %v428
    %v491 = vpack.c.b16 %v433, %v431
    %v492 = vpack.c.b16 %v434, %v432
    %v493 = vpack.c.b16 %v437, %v435
    %v494 = vpack.c.b16 %v438, %v436
    %v495 = vpack.c.b16 %v441, %v439
    %v496 = vpack.c.b16 %v442, %v440
    %v497 = vpack.c.b16 %v445, %v443
    %v498 = vpack.c.b16 %v446, %v444
    %v499 = vpack.c.b16 %v449, %v447
    %v500 = vpack.c.b16 %v450, %v448
    %v501 = vpack.c.b16 %v453, %v451
    %v502 = vpack.c.b16 %v454, %v452
    %551 = vmatprep.subr.bf16.mxu0 %v456
    %552 = vmatpush1.bf16.msra.mxu0 %v455
    %553 = vmatprep.subr.bf16.mxu0 %v458
    %554 = vmatpush1.bf16.msra.mxu0 %v457
    %555 = vmatprep.subr.bf16.mxu0 %v460
    %556 = vmatpush1.bf16.msra.mxu0 %v459
    %557 = vmatprep.subr.bf16.mxu0 %v462
    %558 = vmatpush1.bf16.msra.mxu0 %v461
    %559 = vmatprep.subr.bf16.mxu0 %v464
    %560 = vmatpush1.bf16.msra.mxu0 %v463
    %561 = vmatprep.subr.bf16.mxu0 %v466
    %562 = vmatpush1.bf16.msra.mxu0 %v465
    %563 = vmatprep.subr.bf16.mxu0 %v468
    %564 = vmatpush1.bf16.msra.mxu0 %v467
    %565 = vmatprep.subr.bf16.mxu0 %v470
    %566 = vmatpush1.bf16.msra.mxu0 %v469
    %567 = vmatprep.subr.bf16.mxu0 %v472
    %568 = vmatpush1.bf16.msra.mxu0 %v471
    %569 = vmatprep.subr.bf16.mxu0 %v474
    %570 = vmatpush1.bf16.msra.mxu0 %v473
    %571 = vmatprep.subr.bf16.mxu0 %v476
    %572 = vmatpush1.bf16.msra.mxu0 %v475
    %573 = vmatprep.subr.bf16.mxu0 %v478
    %574 = vmatpush1.bf16.msra.mxu0 %v477
    %575 = vmatprep.subr.bf16.mxu0 %v480
    %576 = vmatpush1.bf16.msra.mxu0 %v479
    %577 = vmatprep.subr.bf16.mxu0 %v482
    %578 = vmatpush1.bf16.msra.mxu0 %v481
    %579 = vmatprep.subr.bf16.mxu0 %v484
    %580 = vmatpush1.bf16.msra.mxu0 %v483
    %581 = vmatprep.subr.bf16.mxu0 %v486
    %582 = vmatpush1.bf16.msra.mxu0 %v485
    %583 = vmatprep.mubr.bf16.mxu0 %v249
    %584 = vmatmul.mubr.bf16.gmra.mrb[0].mxu0 %v248
    %v585 = vpop.f32.mrb[0].mxu0
    %v586 = vadd.f32 %v304, %v585
    %v587 = vpop.f32.mrb[0].mxu0
    %v588 = vadd.f32 %v308, %v587
    %v589 = vpop.f32.mrb[0].mxu0
    %v590 = vpop.f32.mrb[0].mxu0
    %591 = vdwg.mxu0
    %592 = vmatprep.subr.bf16.mxu0 %v488
    %593 = vmatpush1.bf16.msra.mxu0 %v487
    %594 = vmatprep.subr.bf16.mxu0 %v490
    %595 = vmatpush1.bf16.msra.mxu0 %v489
    %596 = vmatprep.subr.bf16.mxu0 %v492
    %597 = vmatpush1.bf16.msra.mxu0 %v491
    %598 = vmatprep.subr.bf16.mxu0 %v494
    %599 = vmatpush1.bf16.msra.mxu0 %v493
    %600 = vmatprep.subr.bf16.mxu0 %v496
    %601 = vmatpush1.bf16.msra.mxu0 %v495
    %602 = vmatprep.subr.bf16.mxu0 %v498
    %603 = vmatpush1.bf16.msra.mxu0 %v497
    %604 = vmatprep.subr.bf16.mxu0 %v500
    %605 = vmatpush1.bf16.msra.mxu0 %v499
    %606 = vmatprep.subr.bf16.mxu0 %v502
    %607 = vmatpush1.bf16.msra.mxu0 %v501
    %608 = vmatprep.subr.bf16.mxu0 0
    %609 = vmatpush1.bf16.msra.mxu0 0
    %610 = vmatprep.subr.bf16.mxu0 0
    %611 = vmatpush1.bf16.msra.mxu0 0
    %612 = vmatprep.subr.bf16.mxu0 0
    %613 = vmatpush1.bf16.msra.mxu0 0
    %614 = vmatprep.subr.bf16.mxu0 0
    %615 = vmatpush1.bf16.msra.mxu0 0
    %616 = vmatprep.subr.bf16.mxu0 0
    %617 = vmatpush1.bf16.msra.mxu0 0
    %618 = vmatprep.subr.bf16.mxu0 0
    %619 = vmatpush1.bf16.msra.mxu0 0
    %620 = vmatprep.subr.bf16.mxu0 0
    %621 = vmatpush1.bf16.msra.mxu0 0
    %622 = vmatprep.subr.bf16.mxu0 0
    %623 = vmatpush1.bf16.msra.mxu0 0
    %624 = vmatprep.mubr.bf16.mxu0 0
    %625 = vmatmul.mubr.bf16.gmra.mrb[0].mxu0 %v250
    %v626 = vpop.f32.mrb[0].mxu0
    %v627 = vadd.f32 %v586, %v626
    %v628 = vpop.f32.mrb[0].mxu0
    %v629 = vadd.f32 %v588, %v628
    %v630 = vpop.f32.mrb[0].mxu0
    %v631 = vpop.f32.mrb[0].mxu0
    %632 = vdwg.mxu0
    %v633 = vmax.f32 %v627, 0.0
    %v634 = vmax.f32 %v629, 0.0
    %v635 = vpack.c.bf16 %v633, %v633
    %v636 = vpack.c.bf16 %v634, %v634
    %v637 = vld [vmem:[#allocation8] sm:$0xff]
    %v638 = vld [vmem:[#allocation8 + $0x8] sm:$0xff]
    %v639 = vld [vmem:[#allocation8 + $0x10] sm:$0xff]
    %v640 = vld [vmem:[#allocation8 + $0x18] sm:$0xff]
    %v641 = vld [vmem:[#allocation8 + $0x20] sm:$0xff]
    %v642 = vld [vmem:[#allocation8 + $0x28] sm:$0xff]
    %v643 = vld [vmem:[#allocation8 + $0x30] sm:$0xff]
    %v644 = vld [vmem:[#allocation8 + $0x38] sm:$0xff]
    %v645 = vld [vmem:[#allocation8 + $0x40] sm:$0xff]
    %v646 = vld [vmem:[#allocation8 + $0x48] sm:$0xff]
    %v647 = vld [vmem:[#allocation8 + $0x50] sm:$0xff]
    %v648 = vld [vmem:[#allocation8 + $0x58] sm:$0xff]
    %v649 = vld [vmem:[#allocation8 + $0x60] sm:$0xff]
    %v650 = vld [vmem:[#allocation8 + $0x68] sm:$0xff]
    %v651 = vld [vmem:[#allocation8 + $0x70] sm:$0xff]
    %v652 = vld [vmem:[#allocation8 + $0x78] sm:$0xff]
    %v653 = vld [vmem:[#allocation8 + $0x80] sm:$0xff]
    %v654 = vld [vmem:[#allocation8 + $0x88] sm:$0xff]
    %v655 = vld [vmem:[#allocation8 + $0x90] sm:$0xff]
    %v656 = vld [vmem:[#allocation8 + $0x98] sm:$0xff]
    %v657 = vld [vmem:[#allocation8 + $0xa0] sm:$0xff]
    %v658 = vld [vmem:[#allocation8 + $0xa8] sm:$0xff]
    %v659 = vld [vmem:[#allocation8 + $0xb0] sm:$0xff]
    %v660 = vld [vmem:[#allocation8 + $0xb8] sm:$0xff]
    %v661 = vld [vmem:[#allocation8 + $0xc0] sm:$0xff]
    %v662 = vld [vmem:[#allocation8 + $0xc8] sm:$0xff]
    %v663 = vld [vmem:[#allocation8 + $0xd0] sm:$0xff]
    %v664 = vld [vmem:[#allocation8 + $0xd8] sm:$0xff]
    %v665 = vld [vmem:[#allocation8 + $0xe0] sm:$0xff]
    %v666 = vld [vmem:[#allocation8 + $0xe8] sm:$0xff]
    %v667 = vld [vmem:[#allocation8 + $0xf0] sm:$0xff]
    %v668 = vld [vmem:[#allocation8 + $0xf8] sm:$0xff]
    %v669 = vld [vmem:[%s6] sm:$0x3]
    %v671 = vlaneseq
    %v672 = vshrl.u32 %v671, 7
    %v673 = vsub.s32 0, %v672
    %v674 = vrot.slane %v669, %v673
    %v675 = vlaneseq
    %v676 = vshrl.u32 %v675, 7
    %v677 = vsub.s32 1, %v676
    %v678 = vrot.slane %v669, %v677
    %v713 = vunpack.c.l.b16 %v637
    %v714 = vunpack.c.h.b16 %v637
    %v715 = vunpack.c.l.b16 %v638
    %v716 = vunpack.c.h.b16 %v638
    %v717 = vunpack.c.l.b16 %v639
    %v718 = vunpack.c.h.b16 %v639
    %v719 = vunpack.c.l.b16 %v640
    %v720 = vunpack.c.h.b16 %v640
    %v721 = vunpack.c.l.b16 %v641
    %v722 = vunpack.c.h.b16 %v641
    %v723 = vunpack.c.l.b16 %v642
    %v724 = vunpack.c.h.b16 %v642
    %v725 = vunpack.c.l.b16 %v643
    %v726 = vunpack.c.h.b16 %v643
    %v727 = vunpack.c.l.b16 %v644
    %v728 = vunpack.c.h.b16 %v644
    %v729 = vunpack.c.l.b16 %v645
    %v730 = vunpack.c.h.b16 %v645
    %v731 = vunpack.c.l.b16 %v646
    %v732 = vunpack.c.h.b16 %v646
    %v733 = vunpack.c.l.b16 %v647
    %v734 = vunpack.c.h.b16 %v647
    %v735 = vunpack.c.l.b16 %v648
    %v736 = vunpack.c.h.b16 %v648
    %v737 = vunpack.c.l.b16 %v649
    %v738 = vunpack.c.h.b16 %v649
    %v739 = vunpack.c.l.b16 %v650
    %v740 = vunpack.c.h.b16 %v650
    %v741 = vunpack.c.l.b16 %v651
    %v742 = vunpack.c.h.b16 %v651
    %v743 = vunpack.c.l.b16 %v652
    %v744 = vunpack.c.h.b16 %v652
    %v745 = vunpack.c.l.b16 %v653
    %v746 = vunpack.c.h.b16 %v653
    %v747 = vunpack.c.l.b16 %v654
    %v748 = vunpack.c.h.b16 %v654
    %v749 = vunpack.c.l.b16 %v655
    %v750 = vunpack.c.h.b16 %v655
    %v751 = vunpack.c.l.b16 %v656
    %v752 = vunpack.c.h.b16 %v656
    %v753 = vunpack.c.l.b16 %v657
    %v754 = vunpack.c.h.b16 %v657
    %v755 = vunpack.c.l.b16 %v658
    %v756 = vunpack.c.h.b16 %v658
    %v757 = vunpack.c.l.b16 %v659
    %v758 = vunpack.c.h.b16 %v659
    %v759 = vunpack.c.l.b16 %v660
    %v760 = vunpack.c.h.b16 %v660
    %v761 = vunpack.c.l.b16 %v661
    %v762 = vunpack.c.h.b16 %v661
    %v763 = vunpack.c.l.b16 %v662
    %v764 = vunpack.c.h.b16 %v662
    %v765 = vunpack.c.l.b16 %v663
    %v766 = vunpack.c.h.b16 %v663
    %v767 = vunpack.c.l.b16 %v664
    %v768 = vunpack.c.h.b16 %v664
    %v769 = vunpack.c.l.b16 %v665
    %v770 = vunpack.c.h.b16 %v665
    %v771 = vunpack.c.l.b16 %v666
    %v772 = vunpack.c.h.b16 %v666
    %v773 = vunpack.c.l.b16 %v667
    %v774 = vunpack.c.h.b16 %v667
    %v775 = vunpack.c.l.b16 %v668
    %v776 = vunpack.c.h.b16 %v668
    %v777 = vpack.c.b16 %v715, %v713
    %v778 = vpack.c.b16 %v716, %v714
    %v779 = vpack.c.b16 %v719, %v717
    %v780 = vpack.c.b16 %v720, %v718
    %v781 = vpack.c.b16 %v723, %v721
    %v782 = vpack.c.b16 %v724, %v722
    %v783 = vpack.c.b16 %v727, %v725
    %v784 = vpack.c.b16 %v728, %v726
    %v785 = vpack.c.b16 %v731, %v729
    %v786 = vpack.c.b16 %v732, %v730
    %v787 = vpack.c.b16 %v735, %v733
    %v788 = vpack.c.b16 %v736, %v734
    %v789 = vpack.c.b16 %v739, %v737
    %v790 = vpack.c.b16 %v740, %v738
    %v791 = vpack.c.b16 %v743, %v741
    %v792 = vpack.c.b16 %v744, %v742
    %v793 = vpack.c.b16 %v747, %v745
    %v794 = vpack.c.b16 %v748, %v746
    %v795 = vpack.c.b16 %v751, %v749
    %v796 = vpack.c.b16 %v752, %v750
    %v797 = vpack.c.b16 %v755, %v753
    %v798 = vpack.c.b16 %v756, %v754
    %v799 = vpack.c.b16 %v759, %v757
    %v800 = vpack.c.b16 %v760, %v758
    %v801 = vpack.c.b16 %v763, %v761
    %v802 = vpack.c.b16 %v764, %v762
    %v803 = vpack.c.b16 %v767, %v765
    %v804 = vpack.c.b16 %v768, %v766
    %v805 = vpack.c.b16 %v771, %v769
    %v806 = vpack.c.b16 %v772, %v770
    %v807 = vpack.c.b16 %v775, %v773
    %v808 = vpack.c.b16 %v776, %v774
    %841 = vmatprep.subr.bf16.mxu0 %v778
    %842 = vmatpush1.bf16.msra.mxu0 %v777
    %843 = vmatprep.subr.bf16.mxu0 %v780
    %844 = vmatpush1.bf16.msra.mxu0 %v779
    %845 = vmatprep.subr.bf16.mxu0 %v782
    %846 = vmatpush1.bf16.msra.mxu0 %v781
    %847 = vmatprep.subr.bf16.mxu0 %v784
    %848 = vmatpush1.bf16.msra.mxu0 %v783
    %849 = vmatprep.subr.bf16.mxu0 %v786
    %850 = vmatpush1.bf16.msra.mxu0 %v785
    %851 = vmatprep.subr.bf16.mxu0 %v788
    %852 = vmatpush1.bf16.msra.mxu0 %v787
    %853 = vmatprep.subr.bf16.mxu0 %v790
    %854 = vmatpush1.bf16.msra.mxu0 %v789
    %855 = vmatprep.subr.bf16.mxu0 %v792
    %856 = vmatpush1.bf16.msra.mxu0 %v791
    %857 = vmatprep.subr.bf16.mxu0 %v794
    %858 = vmatpush1.bf16.msra.mxu0 %v793
    %859 = vmatprep.subr.bf16.mxu0 %v796
    %860 = vmatpush1.bf16.msra.mxu0 %v795
    %861 = vmatprep.subr.bf16.mxu0 %v798
    %862 = vmatpush1.bf16.msra.mxu0 %v797
    %863 = vmatprep.subr.bf16.mxu0 %v800
    %864 = vmatpush1.bf16.msra.mxu0 %v799
    %865 = vmatprep.subr.bf16.mxu0 %v802
    %866 = vmatpush1.bf16.msra.mxu0 %v801
    %867 = vmatprep.subr.bf16.mxu0 %v804
    %868 = vmatpush1.bf16.msra.mxu0 %v803
    %869 = vmatprep.subr.bf16.mxu0 %v806
    %870 = vmatpush1.bf16.msra.mxu0 %v805
    %871 = vmatprep.subr.bf16.mxu0 %v808
    %872 = vmatpush1.bf16.msra.mxu0 %v807
    %873 = vmatprep.mubr.bf16.mxu0 %v636
    %874 = vmatmul.mubr.bf16.gmra.mrb[0].mxu0 %v635
    %v875 = vpop.f32.mrb[0].mxu0
    %v876 = vadd.f32 %v674, %v875
    %v877 = vpop.f32.mrb[0].mxu0
    %v878 = vadd.f32 %v678, %v877
    %v879 = vpop.f32.mrb[0].mxu0
    %v880 = vpop.f32.mrb[0].mxu0
    %881 = vdwg.mxu0
    %v882 = vmax.f32 %v876, 0.0
    %v883 = vmax.f32 %v878, 0.0
    %v884 = vpack.c.bf16 %v882, %v882
    %v885 = vpack.c.bf16 %v883, %v883
    %v886 = vld [vmem:[#allocation10] sm:$0xf]
    %v887 = vld [vmem:[#allocation10 + $0x4] sm:$0xf]
    %v888 = vld [vmem:[#allocation10 + $0x8] sm:$0xf]
    %v889 = vld [vmem:[#allocation10 + $0xc] sm:$0xf]
    %v890 = vld [vmem:[#allocation10 + $0x10] sm:$0xf]
    %v891 = vld [vmem:[#allocation10 + $0x14] sm:$0xf]
    %v892 = vld [vmem:[#allocation10 + $0x18] sm:$0xf]
    %v893 = vld [vmem:[#allocation10 + $0x1c] sm:$0xf]
    %v894 = vld [vmem:[#allocation10 + $0x20] sm:$0xf]
    %v895 = vld [vmem:[#allocation10 + $0x24] sm:$0xf]
    %v896 = vld [vmem:[#allocation10 + $0x28] sm:$0xf]
    %v897 = vld [vmem:[#allocation10 + $0x2c] sm:$0xf]
    %v898 = vld [vmem:[#allocation10 + $0x30] sm:$0xf]
    %v899 = vld [vmem:[#allocation10 + $0x34] sm:$0xf]
    %v900 = vld [vmem:[#allocation10 + $0x38] sm:$0xf]
    %v901 = vld [vmem:[#allocation10 + $0x3c] sm:$0xf]
    %v902 = vld [vmem:[#allocation10 + $0x40] sm:$0xf]
    %v903 = vld [vmem:[#allocation10 + $0x44] sm:$0xf]
    %v904 = vld [vmem:[#allocation10 + $0x48] sm:$0xf]
    %v905 = vld [vmem:[#allocation10 + $0x4c] sm:$0xf]
    %v906 = vld [vmem:[#allocation10 + $0x50] sm:$0xf]
    %v907 = vld [vmem:[#allocation10 + $0x54] sm:$0xf]
    %v908 = vld [vmem:[#allocation10 + $0x58] sm:$0xf]
    %v909 = vld [vmem:[#allocation10 + $0x5c] sm:$0xf]
    %v910 = vld [vmem:[#allocation10 + $0x60] sm:$0xf]
    %v911 = vld [vmem:[#allocation10 + $0x64] sm:$0xf]
    %v912 = vld [vmem:[#allocation10 + $0x68] sm:$0xf]
    %v913 = vld [vmem:[#allocation10 + $0x6c] sm:$0xf]
    %v914 = vld [vmem:[#allocation10 + $0x70] sm:$0xf]
    %v915 = vld [vmem:[#allocation10 + $0x74] sm:$0xf]
    %v916 = vld [vmem:[#allocation10 + $0x78] sm:$0xf]
    %v917 = vld [vmem:[#allocation10 + $0x7c] sm:$0xf]
    %v918 = vld [vmem:[%s8] sm:$0x1]
    %v920 = vlaneseq
    %v921 = vshrl.u32 %v920, 7
    %v922 = vsub.s32 0, %v921
    %v923 = vrot.slane %v918, %v922
    %v957 = vunpack.c.l.b16 %v886
    %v958 = vunpack.c.l.b16 %v887
    %v959 = vunpack.c.l.b16 %v888
    %v960 = vunpack.c.l.b16 %v889
    %v961 = vunpack.c.l.b16 %v890
    %v962 = vunpack.c.l.b16 %v891
    %v963 = vunpack.c.l.b16 %v892
    %v964 = vunpack.c.l.b16 %v893
    %v965 = vunpack.c.l.b16 %v894
    %v966 = vunpack.c.l.b16 %v895
    %v967 = vunpack.c.l.b16 %v896
    %v968 = vunpack.c.l.b16 %v897
    %v969 = vunpack.c.l.b16 %v898
    %v970 = vunpack.c.l.b16 %v899
    %v971 = vunpack.c.l.b16 %v900
    %v972 = vunpack.c.l.b16 %v901
    %v973 = vunpack.c.l.b16 %v902
    %v974 = vunpack.c.l.b16 %v903
    %v975 = vunpack.c.l.b16 %v904
    %v976 = vunpack.c.l.b16 %v905
    %v977 = vunpack.c.l.b16 %v906
    %v978 = vunpack.c.l.b16 %v907
    %v979 = vunpack.c.l.b16 %v908
    %v980 = vunpack.c.l.b16 %v909
    %v981 = vunpack.c.l.b16 %v910
    %v982 = vunpack.c.l.b16 %v911
    %v983 = vunpack.c.l.b16 %v912
    %v984 = vunpack.c.l.b16 %v913
    %v985 = vunpack.c.l.b16 %v914
    %v986 = vunpack.c.l.b16 %v915
    %v987 = vunpack.c.l.b16 %v916
    %v988 = vunpack.c.l.b16 %v917
    %v989 = vpack.c.b16 %v958, %v957
    %v990 = vpack.c.b16 %v960, %v959
    %v991 = vpack.c.b16 %v962, %v961
    %v992 = vpack.c.b16 %v964, %v963
    %v993 = vpack.c.b16 %v966, %v965
    %v994 = vpack.c.b16 %v968, %v967
    %v995 = vpack.c.b16 %v970, %v969
    %v996 = vpack.c.b16 %v972, %v971
    %v997 = vpack.c.b16 %v974, %v973
    %v998 = vpack.c.b16 %v976, %v975
    %v999 = vpack.c.b16 %v978, %v977
    %v1000 = vpack.c.b16 %v980, %v979
    %v1001 = vpack.c.b16 %v982, %v981
    %v1002 = vpack.c.b16 %v984, %v983
    %v1003 = vpack.c.b16 %v986, %v985
    %v1004 = vpack.c.b16 %v988, %v987
    %1021 = vmatprep.subr.bf16.mxu0 0
    %1022 = vmatpush1.bf16.msra.mxu0 %v989
    %1023 = vmatprep.subr.bf16.mxu0 0
    %1024 = vmatpush1.bf16.msra.mxu0 %v990
    %1025 = vmatprep.subr.bf16.mxu0 0
    %1026 = vmatpush1.bf16.msra.mxu0 %v991
    %1027 = vmatprep.subr.bf16.mxu0 0
    %1028 = vmatpush1.bf16.msra.mxu0 %v992
    %1029 = vmatprep.subr.bf16.mxu0 0
    %1030 = vmatpush1.bf16.msra.mxu0 %v993
    %1031 = vmatprep.subr.bf16.mxu0 0
    %1032 = vmatpush1.bf16.msra.mxu0 %v994
    %1033 = vmatprep.subr.bf16.mxu0 0
    %1034 = vmatpush1.bf16.msra.mxu0 %v995
    %1035 = vmatprep.subr.bf16.mxu0 0
    %1036 = vmatpush1.bf16.msra.mxu0 %v996
    %1037 = vmatprep.subr.bf16.mxu0 0
    %1038 = vmatpush1.bf16.msra.mxu0 %v997
    %1039 = vmatprep.subr.bf16.mxu0 0
    %1040 = vmatpush1.bf16.msra.mxu0 %v998
    %1041 = vmatprep.subr.bf16.mxu0 0
    %1042 = vmatpush1.bf16.msra.mxu0 %v999
    %1043 = vmatprep.subr.bf16.mxu0 0
    %1044 = vmatpush1.bf16.msra.mxu0 %v1000
    %1045 = vmatprep.subr.bf16.mxu0 0
    %1046 = vmatpush1.bf16.msra.mxu0 %v1001
    %1047 = vmatprep.subr.bf16.mxu0 0
    %1048 = vmatpush1.bf16.msra.mxu0 %v1002
    %1049 = vmatprep.subr.bf16.mxu0 0
    %1050 = vmatpush1.bf16.msra.mxu0 %v1003
    %1051 = vmatprep.subr.bf16.mxu0 0
    %1052 = vmatpush1.bf16.msra.mxu0 %v1004
    %1053 = vmatprep.mubr.bf16.mxu0 %v885
    %1054 = vmatmul.mubr.bf16.gmra.mrb[0].mxu0 %v884
    %v1055 = vpop.f32.mrb[0].mxu0
    %v1056 = vadd.f32 %v923, %v1055
    %v1057 = vpop.f32.mrb[0].mxu0
    %v1058 = vpop.f32.mrb[0].mxu0
    %v1059 = vpop.f32.mrb[0].mxu0
    %1060 = vdwg.mxu0
    %v1061 = vmax.f32 %v1056, 0.0
    %v1062 = vpack.c.bf16 %v1061, %v1061
    %v1063 = vld [vmem:[#allocation11] sm:$0xf]
    %v1064 = vld [vmem:[#allocation11 + $0x4] sm:$0xf]
    %v1065 = vld [vmem:[#allocation11 + $0x8] sm:$0xf]
    %v1066 = vld [vmem:[#allocation11 + $0xc] sm:$0xf]
    %v1067 = vld [vmem:[#allocation11 + $0x10] sm:$0xf]
    %v1068 = vld [vmem:[#allocation11 + $0x14] sm:$0xf]
    %v1069 = vld [vmem:[#allocation11 + $0x18] sm:$0xf]
    %v1070 = vld [vmem:[#allocation11 + $0x1c] sm:$0xf]
    %v1071 = vld [vmem:[#allocation11 + $0x20] sm:$0xf]
    %v1072 = vld [vmem:[#allocation11 + $0x24] sm:$0xf]
    %v1073 = vld [vmem:[#allocation11 + $0x28] sm:$0xf]
    %v1074 = vld [vmem:[#allocation11 + $0x2c] sm:$0xf]
    %v1075 = vld [vmem:[#allocation11 + $0x30] sm:$0xf]
    %v1076 = vld [vmem:[#allocation11 + $0x34] sm:$0xf]
    %v1077 = vld [vmem:[#allocation11 + $0x38] sm:$0xf]
    %v1078 = vld [vmem:[#allocation11 + $0x3c] sm:$0xf]
    %v1079 = vld [vmem:[%s10] sm:$0x1]
    %v1081 = vlaneseq
    %v1082 = vshrl.u32 %v1081, 7
    %v1083 = vsub.s32 0, %v1082
    %v1084 = vrot.slane %v1079, %v1083
    %v1102 = vunpack.c.l.b16 %v1063
    %v1103 = vunpack.c.l.b16 %v1064
    %v1104 = vunpack.c.l.b16 %v1065
    %v1105 = vunpack.c.l.b16 %v1066
    %v1106 = vunpack.c.l.b16 %v1067
    %v1107 = vunpack.c.l.b16 %v1068
    %v1108 = vunpack.c.l.b16 %v1069
    %v1109 = vunpack.c.l.b16 %v1070
    %v1110 = vunpack.c.l.b16 %v1071
    %v1111 = vunpack.c.l.b16 %v1072
    %v1112 = vunpack.c.l.b16 %v1073
    %v1113 = vunpack.c.l.b16 %v1074
    %v1114 = vunpack.c.l.b16 %v1075
    %v1115 = vunpack.c.l.b16 %v1076
    %v1116 = vunpack.c.l.b16 %v1077
    %v1117 = vunpack.c.l.b16 %v1078
    %v1118 = vpack.c.b16 %v1103, %v1102
    %v1119 = vpack.c.b16 %v1105, %v1104
    %v1120 = vpack.c.b16 %v1107, %v1106
    %v1121 = vpack.c.b16 %v1109, %v1108
    %v1122 = vpack.c.b16 %v1111, %v1110
    %v1123 = vpack.c.b16 %v1113, %v1112
    %v1124 = vpack.c.b16 %v1115, %v1114
    %v1125 = vpack.c.b16 %v1117, %v1116
    %1134 = vmatprep.subr.bf16.mxu0 0
    %1135 = vmatpush1.bf16.msra.mxu0 %v1118
    %1136 = vmatprep.subr.bf16.mxu0 0
    %1137 = vmatpush1.bf16.msra.mxu0 %v1119
    %1138 = vmatprep.subr.bf16.mxu0 0
    %1139 = vmatpush1.bf16.msra.mxu0 %v1120
    %1140 = vmatprep.subr.bf16.mxu0 0
    %1141 = vmatpush1.bf16.msra.mxu0 %v1121
    %1142 = vmatprep.subr.bf16.mxu0 0
    %1143 = vmatpush1.bf16.msra.mxu0 %v1122
    %1144 = vmatprep.subr.bf16.mxu0 0
    %1145 = vmatpush1.bf16.msra.mxu0 %v1123
    %1146 = vmatprep.subr.bf16.mxu0 0
    %1147 = vmatpush1.bf16.msra.mxu0 %v1124
    %1148 = vmatprep.subr.bf16.mxu0 0
    %1149 = vmatpush1.bf16.msra.mxu0 %v1125
    %1150 = vmatprep.subr.bf16.mxu0 0
    %1151 = vmatpush1.bf16.msra.mxu0 0
    %1152 = vmatprep.subr.bf16.mxu0 0
    %1153 = vmatpush1.bf16.msra.mxu0 0
    %1154 = vmatprep.subr.bf16.mxu0 0
    %1155 = vmatpush1.bf16.msra.mxu0 0
    %1156 = vmatprep.subr.bf16.mxu0 0
    %1157 = vmatpush1.bf16.msra.mxu0 0
    %1158 = vmatprep.subr.bf16.mxu0 0
    %1159 = vmatpush1.bf16.msra.mxu0 0
    %1160 = vmatprep.subr.bf16.mxu0 0
    %1161 = vmatpush1.bf16.msra.mxu0 0
    %1162 = vmatprep.subr.bf16.mxu0 0
    %1163 = vmatpush1.bf16.msra.mxu0 0
    %1164 = vmatprep.subr.bf16.mxu0 0
    %1165 = vmatpush1.bf16.msra.mxu0 0
    %1166 = vmatprep.mubr.bf16.mxu0 0
    %1167 = vmatmul.mubr.bf16.gmra.mrb[0].mxu0 %v1062
    %v1168 = vpop.f32.mrb[0].mxu0
    %v1169 = vadd.f32 %v1084, %v1168
    %v1170 = vpop.f32.mrb[0].mxu0
    %v1171 = vpop.f32.mrb[0].mxu0
    %v1172 = vpop.f32.mrb[0].mxu0
    %1173 = vdwg.mxu0
    %1174 = vst [vmem:[#allocation13] sm:$0xff] %v1169
    // Predicated region
    $region70: #{tpu_custom_call.1} parent=1 // pred_check
      _
    $region71: #{tpu_custom_call.1} parent=1 // pred_check_branch
      %1176 = sbr.rel (0) target = $region73
    $region72: #{tpu_custom_call.1} parent=1 // pred_region
      %s1178 = ssub.s32 128, 128
      %1179 = vsyncadd [#allocation4], %s1178
      %s1181 = sshll.u32 [#allocation13], 4
      %s1182 = int_to_ptr.vmem [resolvable:$true] %s1181
      %1184 = dma.vmem_to_hbm [thread:$0]  %s1182, 128, %s11, [#allocation4]
    $region73: #{tpu_custom_call.1} parent=1 // pred_fallthru
      _
    // Predicated region
    $region74: #{tpu_custom_call.1} parent=1 // pred_check
      _
    $region75: #{tpu_custom_call.1} parent=1 // pred_check_branch
      %1186 = sbr.rel (0) target = $region77
    $region76: #{tpu_custom_call.1} parent=1 // pred_region
      %1187 = dma.done [#allocation4], 128
    $region77: #{tpu_custom_call.1} parent=1 // pred_fallthru
      _
    %1188 = vsyncpa [#allocation3], 1
    %1189 = vsyncpa [#allocation6], 1
    %1190 = vsyncpa [#allocation9], 1
    %1191 = vsyncpa [#allocation12], 1
    %1192 = vsyncpa [#allocation4], 1

</llo_original>
